<compile_context>
chip_gen: v7x
topology: tpu7x:2x2x1
jax: 0.10.0
libtpu: 0.0.40
codegen_flags: <defaults>
</compile_context>

<pallas_src>
import jax
import jax.numpy as jnp
from jax import lax
from jax.experimental import pallas as pl
from jax.experimental.pallas import tpu as pltpu

LANE = 128     # lane width: pad feature dim to a multiple of this for lane-dense stores
SUBLANE = 8    # sublane width: pad node dim to a multiple of this


def _round_up(x, m):
    return ((x + m - 1) // m) * m


# ----------------------------------------------------------------------------
# Fused kernel: edge-weight 'both' normalization + num_layers x GraphConv.
# Grid = (num_layers,), sequential ("arbitrary").  h and normalized adjacency
# live in VMEM scratch across all layers.
# ----------------------------------------------------------------------------
def _gcn_fused_kernel(e_ref, h0_ref, w_ref, b_ref, o_ref, en_sc, h_sc):
    layer = pl.program_id(0)

    @pl.when(layer == 0)
    def _():
        e = e_ref[...]                                      # (Np, Np), e[u, v] = weight of u->v
        out_deg = jnp.sum(e, axis=1, keepdims=True)         # (Np, 1) weighted out-degree of src u
        in_deg = jnp.sum(e, axis=0, keepdims=True)          # (1, Np) weighted in-degree of dst v
        # Self-loops guarantee strictly positive degrees (EdgeWeightNorm eps defaults to 0).
        # Kept in source-major layout: NO transpose; the transposed contraction is done by
        # dot_general on the MXU below.  Computed once, VMEM-resident for all layers.
        en_sc[...] = e * lax.rsqrt(out_deg) * lax.rsqrt(in_deg)
        h_sc[...] = h0_ref[...]

    # Aggregation: h_new[v, c] = sum_u e_norm[u, v] * h[u, c]  (contract over source axis u)
    agg = lax.dot_general(
        en_sc[...], h_sc[...],
        dimension_numbers=(((0,), (0,)), ((), ())),
        preferred_element_type=jnp.float32)                 # (Np, Dp)
    # Linear transform + bias (bias added once per layer, not per tile).
    out = jnp.dot(agg, w_ref[...], preferred_element_type=jnp.float32) + b_ref[...]
    h_sc[...] = out

    @pl.when(layer == pl.num_programs(0) - 1)
    def _():
        o_ref[...] = out.astype(o_ref.dtype)


# ----------------------------------------------------------------------------
# Wrapper: pad to TPU-friendly shapes, stack per-layer params, one pallas_call.
# ----------------------------------------------------------------------------
def graph_conv_net_forward(edge_w, inputs, params):
    # edge_w: (N, N) dense weighted adjacency, diagonal already = 1.0 (self loops)
    n, d = inputs.shape
    num_layers = len(params)
    n_pad = _round_up(max(n, SUBLANE), SUBLANE)
    d_pad = _round_up(max(d, LANE), LANE)

    # Pad the graph: padded nodes get a unit self-loop (positive degree, rsqrt stays finite)
    # and are disconnected from real nodes, so real-node results are unchanged.
    e = jnp.pad(edge_w.astype(jnp.float32), ((0, n_pad - n), (0, n_pad - n)))
    if n_pad > n:
        e = e + jnp.diag((jnp.arange(n_pad) >= n).astype(jnp.float32))

    h0 = jnp.pad(inputs.astype(jnp.float32), ((0, n_pad - n), (0, d_pad - d)))

    w_stack = jnp.stack([w for (w, _) in params]).astype(jnp.float32)        # (L, d, d)
    b_stack = jnp.stack([b for (_, b) in params]).astype(jnp.float32)[:, None, :]  # (L, 1, d)
    w_stack = jnp.pad(w_stack, ((0, 0), (0, d_pad - d), (0, d_pad - d)))     # (L, Dp, Dp)
    b_stack = jnp.pad(b_stack, ((0, 0), (0, 0), (0, d_pad - d)))             # (L, 1, Dp)

    flops = num_layers * (2 * n_pad * n_pad * d_pad + 2 * n_pad * d_pad * d_pad)
    bytes_accessed = 4 * (n_pad * n_pad + 2 * n_pad * d_pad
                          + num_layers * (d_pad * d_pad + d_pad))

    out = pl.pallas_call(
        _gcn_fused_kernel,
        out_shape=jax.ShapeDtypeStruct((n_pad, d_pad), jnp.float32),
        grid_spec=pltpu.PrefetchScalarGridSpec(
            num_scalar_prefetch=0,
            grid=(num_layers,),
            in_specs=[
                pl.BlockSpec((n_pad, n_pad), lambda l: (0, 0)),        # edge weights (constant)
                pl.BlockSpec((n_pad, d_pad), lambda l: (0, 0)),        # initial features
                pl.BlockSpec((None, d_pad, d_pad), lambda l: (l, 0, 0)),  # W of layer l
                pl.BlockSpec((None, 1, d_pad), lambda l: (l, 0, 0)),      # b of layer l
            ],
            out_specs=pl.BlockSpec((n_pad, d_pad), lambda l: (0, 0)),
            scratch_shapes=[
                pltpu.VMEM((n_pad, n_pad), jnp.float32),   # normalized adjacency (VMEM-only)
                pltpu.VMEM((n_pad, d_pad), jnp.float32),   # h, resident across layers
            ],
        ),
        compiler_params=pltpu.CompilerParams(
            dimension_semantics=("arbitrary",),            # layers are sequentially dependent
        ),
        cost_estimate=pl.CostEstimate(
            flops=flops, transcendentals=2 * n_pad, bytes_accessed=bytes_accessed),
    )(e, h0, w_stack, b_stack)

    return out[:n, :d]


# ----------------------------------------------------------------------------
# Parameter init (matches DGL GraphConv: xavier_uniform weight, zero bias)
# ----------------------------------------------------------------------------
def init_params(key, num_layers, h_dim):
    params = []
    for _ in range(num_layers):
        key, wk = jax.random.split(key)
        bound = (6.0 / (h_dim + h_dim)) ** 0.5
        w = jax.random.uniform(wk, (h_dim, h_dim), jnp.float32, -bound, bound)
        b = jnp.zeros((h_dim,), jnp.float32)
        params.append((w, b))
    return params


# Pure-JAX reference for sanity checking.
def _reference(edge_w, inputs, params):
    out_deg = jnp.sum(edge_w, axis=1, keepdims=True)
    in_deg = jnp.sum(edge_w, axis=0, keepdims=True)
    e_norm = edge_w / (jnp.sqrt(out_deg) * jnp.sqrt(in_deg))
    a = e_norm.T
    h = inputs
    for (w, b) in params:
        h = a @ h @ w + b
    return h


if __name__ == "__main__":
    NUM_LAYERS = 2
    H_DIM = 32
    N_NODES = 16

    key = jax.random.PRNGKey(0)
    k_edge, k_mask, k_feat, k_param = jax.random.split(key, 4)

    # Build a small synthetic weighted graph (dense form).
    raw_w = jnp.abs(jax.random.normal(k_edge, (N_NODES, N_NODES), jnp.float32)) + 0.1
    mask = (jax.random.uniform(k_mask, (N_NODES, N_NODES)) < 0.4).astype(jnp.float32)
    edge_w = raw_w * mask
    # remove_self_loop + add_self_loop with default fill_data=1.0 -> diagonal = 1.0
    eye = jnp.eye(N_NODES, dtype=jnp.float32)
    edge_w = edge_w * (1.0 - eye) + eye

    inputs = jax.random.normal(k_feat, (N_NODES, H_DIM), jnp.float32)
    params = init_params(k_param, NUM_LAYERS, H_DIM)

    out = graph_conv_net_forward(edge_w, inputs, params)
    out = jax.block_until_ready(out)

    ref = _reference(edge_w, inputs, params)
    assert out.shape == (N_NODES, H_DIM)
    assert jnp.allclose(out, ref, rtol=1e-4, atol=1e-4), "mismatch vs reference"

    print("KERNEL_OK")
</pallas_src>

<mosaic_0001>
module attributes {stable_mosaic.version = 11 : i64} {
  func.func @_gcn_fused_kernel(%arg0: i32, %arg1: memref<16x16xf32, #tpu.memory_space<vmem>>, %arg2: memref<16x128xf32, #tpu.memory_space<vmem>>, %arg3: memref<1x128x128xf32, #tpu.memory_space<vmem>>, %arg4: memref<1x1x128xf32, #tpu.memory_space<vmem>>, %arg5: memref<16x128xf32, #tpu.memory_space<vmem>>, %arg6: memref<16x16xf32, #tpu.memory_space<vmem>>, %arg7: memref<16x128xf32, #tpu.memory_space<vmem>>) attributes {dimension_semantics = [#tpu.dimension_semantics<arbitrary>], iteration_bounds = array<i64: 2>, scalar_prefetch = 0 : i64, scratch_operands = 2 : i64, tpu.core_type = #tpu.core_type<tc>, window_params = [{pipeline_mode = #tpu.pipeline_mode<synchronous>, transform_indices = @transform_0, window_bounds = array<i64: 16, 16>}, {pipeline_mode = #tpu.pipeline_mode<synchronous>, transform_indices = @transform_1, window_bounds = array<i64: 16, 128>}, {transform_indices = @transform_2, window_bounds = array<i64: 1, 128, 128>}, {transform_indices = @transform_3, window_bounds = array<i64: 1, 1, 128>}, {pipeline_mode = #tpu.pipeline_mode<synchronous>, transform_indices = @transform_4, window_bounds = array<i64: 16, 128>}]} {
    %c0_i32 = arith.constant 0 : i32
    %0 = arith.cmpi eq, %arg0, %c0_i32 : i32
    %1 = arith.extui %0 : i1 to i32
    %c0_i32_0 = arith.constant 0 : i32
    %2 = arith.cmpi ne, %1, %c0_i32_0 : i32
    scf.if %2 {
      %c0_14 = arith.constant 0 : index
      %c0_15 = arith.constant 0 : index
      %17 = vector.load %arg1[%c0_14, %c0_15] : memref<16x16xf32, #tpu.memory_space<vmem>>, vector<16x16xf32>
      %cst_16 = arith.constant dense<0.000000e+00> : vector<16xf32>
      %18 = vector.multi_reduction <add>, %17, %cst_16 [1] : vector<16x16xf32> to vector<16xf32>
      %19 = vector.shape_cast %18 : vector<16xf32> to vector<16x1xf32>
      %cst_17 = arith.constant dense<0.000000e+00> : vector<16xf32>
      %20 = vector.multi_reduction <add>, %17, %cst_17 [0] : vector<16x16xf32> to vector<16xf32>
      %21 = vector.shape_cast %20 : vector<16xf32> to vector<1x16xf32>
      %22 = math.rsqrt %19 : vector<16x1xf32>
      %23 = vector.broadcast %22 : vector<16x1xf32> to vector<16x16xf32>
      %24 = arith.mulf %17, %23 : vector<16x16xf32>
      %25 = math.rsqrt %21 : vector<1x16xf32>
      %26 = vector.broadcast %25 : vector<1x16xf32> to vector<16x16xf32>
      %27 = arith.mulf %24, %26 : vector<16x16xf32>
      %c0_18 = arith.constant 0 : index
      %c0_19 = arith.constant 0 : index
      %28 = vector.load %arg6[%c0_18, %c0_19] : memref<16x16xf32, #tpu.memory_space<vmem>>, vector<16x16xf32>
      tpu.vector_store %arg6[%c0_18, %c0_19], %27 {strides = array<i32>} : memref<16x16xf32, #tpu.memory_space<vmem>>, vector<16x16xf32>,
      %c0_20 = arith.constant 0 : index
      %c0_21 = arith.constant 0 : index
      %29 = vector.load %arg2[%c0_20, %c0_21] : memref<16x128xf32, #tpu.memory_space<vmem>>, vector<16x128xf32>
      %c0_22 = arith.constant 0 : index
      %c0_23 = arith.constant 0 : index
      %30 = vector.load %arg7[%c0_22, %c0_23] : memref<16x128xf32, #tpu.memory_space<vmem>>, vector<16x128xf32>
      tpu.vector_store %arg7[%c0_22, %c0_23], %29 {strides = array<i32>} : memref<16x128xf32, #tpu.memory_space<vmem>>, vector<16x128xf32>,
    } else {
    }
    %c0 = arith.constant 0 : index
    %c0_1 = arith.constant 0 : index
    %3 = vector.load %arg6[%c0, %c0_1] : memref<16x16xf32, #tpu.memory_space<vmem>>, vector<16x16xf32>
    %c0_2 = arith.constant 0 : index
    %c0_3 = arith.constant 0 : index
    %4 = vector.load %arg7[%c0_2, %c0_3] : memref<16x128xf32, #tpu.memory_space<vmem>>, vector<16x128xf32>
    %cst = arith.constant dense<0.000000e+00> : vector<16x128xf32>
    %5 = tpu.matmul %3, %4, %cst {dimension_numbers = #tpu.dot_dimension_numbers<[0], [0], [1], [1], [0, 1, 1, 1], [], []>} : vector<16x16xf32>, vector<16x128xf32>, vector<16x128xf32> -> vector<16x128xf32>
    %c0_4 = arith.constant 0 : index
    %c0_5 = arith.constant 0 : index
    %c0_6 = arith.constant 0 : index
    %6 = vector.load %arg3[%c0_4, %c0_5, %c0_6] : memref<1x128x128xf32, #tpu.memory_space<vmem>>, vector<1x128x128xf32>
    %7 = vector.shape_cast %6 : vector<1x128x128xf32> to vector<128x128xf32>
    %cst_7 = arith.constant dense<0.000000e+00> : vector<16x128xf32>
    %8 = tpu.matmul %5, %7, %cst_7 {dimension_numbers = #tpu.dot_dimension_numbers<[1], [0], [0], [1], [0, 0, 1, 1], [], []>} : vector<16x128xf32>, vector<128x128xf32>, vector<16x128xf32> -> vector<16x128xf32>
    %c0_8 = arith.constant 0 : index
    %c0_9 = arith.constant 0 : index
    %c0_10 = arith.constant 0 : index
    %9 = vector.load %arg4[%c0_8, %c0_9, %c0_10] : memref<1x1x128xf32, #tpu.memory_space<vmem>>, vector<1x1x128xf32>
    %10 = vector.shape_cast %9 : vector<1x1x128xf32> to vector<1x128xf32>
    %11 = vector.broadcast %10 : vector<1x128xf32> to vector<16x128xf32>
    %12 = arith.addf %8, %11 : vector<16x128xf32>
    %c0_11 = arith.constant 0 : index
    %c0_12 = arith.constant 0 : index
    %13 = vector.load %arg7[%c0_11, %c0_12] : memref<16x128xf32, #tpu.memory_space<vmem>>, vector<16x128xf32>
    tpu.vector_store %arg7[%c0_11, %c0_12], %12 {strides = array<i32>} : memref<16x128xf32, #tpu.memory_space<vmem>>, vector<16x128xf32>,
    %c1_i32 = arith.constant 1 : i32
    %14 = arith.cmpi eq, %arg0, %c1_i32 : i32
    %15 = arith.extui %14 : i1 to i32
    %c0_i32_13 = arith.constant 0 : i32
    %16 = arith.cmpi ne, %15, %c0_i32_13 : i32
    scf.if %16 {
      %c0_14 = arith.constant 0 : index
      %c0_15 = arith.constant 0 : index
      %17 = vector.load %arg5[%c0_14, %c0_15] : memref<16x128xf32, #tpu.memory_space<vmem>>, vector<16x128xf32>
      tpu.vector_store %arg5[%c0_14, %c0_15], %12 {strides = array<i32>} : memref<16x128xf32, #tpu.memory_space<vmem>>, vector<16x128xf32>,
    } else {
    }
    return
  }
  func.func @transform_0(%arg0: i32) -> (i32, i32) {
    %c0_i32 = arith.constant 0 : i32
    %c0_i32_0 = arith.constant 0 : i32
    %c0_i32_1 = arith.constant 0 : i32
    return %c0_i32, %c0_i32_0 : i32, i32
  }
  func.func @transform_1(%arg0: i32) -> (i32, i32) {
    %c0_i32 = arith.constant 0 : i32
    %c0_i32_0 = arith.constant 0 : i32
    %c0_i32_1 = arith.constant 0 : i32
    return %c0_i32, %c0_i32_0 : i32, i32
  }
  func.func @transform_2(%arg0: i32) -> (i32, i32, i32) {
    %c0_i32 = arith.constant 0 : i32
    %c0_i32_0 = arith.constant 0 : i32
    %c0_i32_1 = arith.constant 0 : i32
    return %arg0, %c0_i32, %c0_i32_0 : i32, i32, i32
  }
  func.func @transform_3(%arg0: i32) -> (i32, i32, i32) {
    %c0_i32 = arith.constant 0 : i32
    %c0_i32_0 = arith.constant 0 : i32
    %c0_i32_1 = arith.constant 0 : i32
    return %arg0, %c0_i32, %c0_i32_0 : i32, i32, i32
  }
  func.func @transform_4(%arg0: i32) -> (i32, i32) {
    %c0_i32 = arith.constant 0 : i32
    %c0_i32_0 = arith.constant 0 : i32
    %c0_i32_1 = arith.constant 0 : i32
    return %c0_i32, %c0_i32_0 : i32, i32
  }
}

</mosaic_0001>

<llo_original>
// kernel: tpu_custom_call.1
$region0: #{tpu_custom_call.1}
  #allocation0 [shape = 'u32[]', space=smem, size = 0x4, offset = 0x4, fixed_abs, tag = 'smem constant byte address 0x4 - core index']
  #allocation1 [shape = 'u32[144,128]{1,0:T(1,128)}', space=vmem, size = 0x12000, scoped, tag = 'internal scratch']
  #allocation2 [shape = 'f32[16,16]{1,0:T(8,128)}', space=vmem, size = 0x2000, scoped, tag = 'scratch operand']
  #allocation3 [shape = 'f32[16,128]{1,0:T(8,128)}', space=vmem, size = 0x2000, scoped, tag = 'scratch operand']
  %s0 = inlined_call_operand.hbm [shape: f32[16,16], index: 0, kind: input, shape index: {}]
  %s1 = inlined_call_operand.hbm [shape: f32[16,128], index: 1, kind: input, shape index: {}]
  %s2 = inlined_call_operand.hbm [shape: f32[2,128,128], index: 2, kind: input, shape index: {}]
  %s3 = inlined_call_operand.vmem [shape: f32[2,1,128], index: 3, kind: input, shape index: {}]
  %s4 = inlined_call_operand.hbm [shape: f32[16,128], index: 4, kind: output, shape index: {}]
  %s5 = sld [smem:[#allocation0]]
  $region69: #{tpu_custom_call.1} parent=0
    _
  %s7 = ssub.s32 1, %s5
  %s8 = scalar_select 0, %s7, %s5
  $region1: #{tpu_custom_call.1} parent=0
    #allocation4 [shape = 'u8[8192]{0}', space=vmem, size = 0x2000, scoped, tag = 'input window, operand 0, single buffered']
    #allocation5 [shape = 's32[2]{0}', space=sflag, size = 0x8, scoped, tag = 'scoped memory for tpu_custom_call.1']
    #allocation6 [shape = 's32[2]{0}', space=sflag, size = 0x8, scoped, tag = 'scoped memory for tpu_custom_call.1']
    #allocation7 [shape = 'u8[8192]{0}', space=vmem, size = 0x2000, scoped, tag = 'input window, operand 1, single buffered']
    #allocation8 [shape = 's32[1]{0}', space=sflag, size = 0x4, scoped, tag = 'scoped memory for tpu_custom_call.1']
    #allocation9 [shape = 'u8[131072]{0}', space=vmem, size = 0x20000, scoped, tag = 'input window, operand 2']
    #allocation10 [shape = 'u8[8192]{0}', space=vmem, size = 0x2000, scoped, tag = 'output window, operand 0, single buffered']
    %9 = vsyncpa [#allocation5], 0
    %10 = vsyncpa [#allocation8], 0
    %11 = vsyncpa [#allocation6], 0
    loop: start=0, step=1, limit=4
    $region2: #{tpu_custom_call.1} parent=1 // loop_pre_header
      _
    $region3: #{tpu_custom_call.1} parent=1 // loop_header
      %s13 = sphi 0, %s17
      %p14 = scmp.ge.s32.totalorder %s13, 4
      %s21 = sphi 0, %s21
      %s23 = sphi 0, %s21
      %s24 = sphi 0, %s23
      %s38 = sphi 0, %s24
      %s42 = sphi 0, %s42
      %s44 = sphi 0, %s42
      %s45 = sphi 0, %s44
      %s59 = sphi 0, %s45
      %s65 = sphi 0, %s67
      %s68 = sphi 0, %s65
      %s69 = sphi 0, %s68
      %s85 = sphi 0, %s69
      %s91 = sphi 0, %s93
      %s94 = sphi 0, %s91
      %s95 = sphi 0, %s94
      %s111 = sphi 0, %s95
      %s115 = sphi 0, %s115
      %s117 = sphi 0, %s115
      %s118 = sphi 0, %s117
      %s132 = sphi 0, %s118
    $region4: #{tpu_custom_call.1} parent=1 // loop_header_branch
      %16 = sbr.rel (%p14) target = $region8
    $region5: #{tpu_custom_call.1} parent=1 // loop_body
      %s18 = ssub.s32 %s13, 1
      %s19 = ssub.s32 %s13, 2
      %s20 = sadd.s32 %s13, 1
      %s22 = sadd.s32 %s21, 1
      %p25 = scmp.eq.s32.totalorder %s13, 1
      %p26 = scmp.ne.s32.totalorder %s21, %s23
      %p27 = scmp.eq.s32.totalorder %s13, 0
      %p28 = por %p26, %p27
      %p29 = scmp.ne.s32.totalorder %s21, %s23
      %p30 = scmp.eq.s32.totalorder %s18, 1
      %p31 = por %p29, %p30
      %p32 = scmp.ne.s32.totalorder %s23, %s24
      %p33 = scmp.eq.s32.totalorder %s18, 0
      %p34 = por %p32, %p33
      %p35 = scmp.ne.s32.totalorder %s23, %s24
      %p36 = scmp.eq.s32.totalorder %s19, 1
      %p37 = por %p35, %p36
      %p39 = scmp.ne.s32.totalorder %s24, %s38
      %p40 = scmp.eq.s32.totalorder %s19, 0
      %p41 = por %p39, %p40
      %s43 = sadd.s32 %s42, 1
      %p46 = scmp.eq.s32.totalorder %s13, 1
      %p47 = scmp.ne.s32.totalorder %s42, %s44
      %p48 = scmp.eq.s32.totalorder %s13, 0
      %p49 = por %p47, %p48
      %p50 = scmp.ne.s32.totalorder %s42, %s44
      %p51 = scmp.eq.s32.totalorder %s18, 1
      %p52 = por %p50, %p51
      %p53 = scmp.ne.s32.totalorder %s44, %s45
      %p54 = scmp.eq.s32.totalorder %s18, 0
      %p55 = por %p53, %p54
      %p56 = scmp.ne.s32.totalorder %s44, %s45
      %p57 = scmp.eq.s32.totalorder %s19, 1
      %p58 = por %p56, %p57
      %p60 = scmp.ne.s32.totalorder %s45, %s59
      %p61 = scmp.eq.s32.totalorder %s19, 0
      %p62 = por %p60, %p61
      %s63 = ssub.s32 %s13, %s20
      %p64 = scmp.eq.s32.totalorder %s63, 0
      %s66 = sadd.s32 %s65, 1
      %s67 = scalar_select %p64, %s65, %s66
      %p70 = pneg %p64
      %p71 = scmp.eq.s32.totalorder %s13, 1
      %p72 = por %p70, %p71
      %p73 = scmp.ne.s32.totalorder %s65, %s68
      %p74 = scmp.eq.s32.totalorder %s13, 0
      %p75 = por %p73, %p74
      %p76 = scmp.ne.s32.totalorder %s65, %s68
      %p77 = scmp.eq.s32.totalorder %s18, 1
      %p78 = por %p76, %p77
      %p79 = scmp.ne.s32.totalorder %s68, %s69
      %p80 = scmp.eq.s32.totalorder %s18, 0
      %p81 = por %p79, %p80
      %p82 = scmp.ne.s32.totalorder %s68, %s69
      %p83 = scmp.eq.s32.totalorder %s19, 1
      %p84 = por %p82, %p83
      %p86 = scmp.ne.s32.totalorder %s69, %s85
      %p87 = scmp.eq.s32.totalorder %s19, 0
      %p88 = por %p86, %p87
      %s89 = ssub.s32 %s13, %s20
      %p90 = scmp.eq.s32.totalorder %s89, 0
      %s92 = sadd.s32 %s91, 1
      %s93 = scalar_select %p90, %s91, %s92
      %p96 = pneg %p90
      %p97 = scmp.eq.s32.totalorder %s13, 1
      %p98 = por %p96, %p97
      %p99 = scmp.ne.s32.totalorder %s91, %s94
      %p100 = scmp.eq.s32.totalorder %s13, 0
      %p101 = por %p99, %p100
      %p102 = scmp.ne.s32.totalorder %s91, %s94
      %p103 = scmp.eq.s32.totalorder %s18, 1
      %p104 = por %p102, %p103
      %p105 = scmp.ne.s32.totalorder %s94, %s95
      %p106 = scmp.eq.s32.totalorder %s18, 0
      %p107 = por %p105, %p106
      %p108 = scmp.ne.s32.totalorder %s94, %s95
      %p109 = scmp.eq.s32.totalorder %s19, 1
      %p110 = por %p108, %p109
      %p112 = scmp.ne.s32.totalorder %s95, %s111
      %p113 = scmp.eq.s32.totalorder %s19, 0
      %p114 = por %p112, %p113
      %s116 = sadd.s32 %s115, 1
      %p119 = scmp.eq.s32.totalorder %s13, 1
      %p120 = scmp.ne.s32.totalorder %s115, %s117
      %p121 = scmp.eq.s32.totalorder %s13, 0
      %p122 = por %p120, %p121
      %p123 = scmp.ne.s32.totalorder %s115, %s117
      %p124 = scmp.eq.s32.totalorder %s18, 1
      %p125 = por %p123, %p124
      %p126 = scmp.ne.s32.totalorder %s117, %s118
      %p127 = scmp.eq.s32.totalorder %s18, 0
      %p128 = por %p126, %p127
      %p129 = scmp.ne.s32.totalorder %s117, %s118
      %p130 = scmp.eq.s32.totalorder %s19, 1
      %p131 = por %p129, %p130
      %p133 = scmp.ne.s32.totalorder %s118, %s132
      %p134 = scmp.eq.s32.totalorder %s19, 0
      %p135 = por %p133, %p134
      %p136 = scmp.le.s32.totalorder 1, %s13
      %p137 = scmp.lt.s32.totalorder %s13, 3
      %p138 = pnand %p136, %p137
      %p139 = pneg %p138
      // Predicated region
      $region9: #{tpu_custom_call.1} parent=5 // pred_check
        _
      $region10: #{tpu_custom_call.1} parent=5 // pred_check_branch
        %141 = sbr.rel (%p138) target = $region12
      $region11: #{tpu_custom_call.1} parent=5 // pred_region
        %s142 = ssub.s32 %s13, 1
        // Predicated region
        $region13: #{tpu_custom_call.1} parent=11 // pred_check
          %p143 = pneg %p34
        $region14: #{tpu_custom_call.1} parent=11 // pred_check_branch
          %145 = sbr.rel (%p143) target = $region16
        $region15: #{tpu_custom_call.1} parent=11 // pred_region
          %s147 = ssub.s32 256, 256
          %148 = vsyncadd [#allocation5], %s147
          %s149 = sshll.u32 [#allocation4], 4
          %s150 = int_to_ptr.vmem [resolvable:$true] %s149
          %155 = dma.hbm_to_vmem [thread:$0]  %s0, 256, %s150, [#allocation5], 128, 128, 8
        $region16: #{tpu_custom_call.1} parent=11 // pred_fallthru
          _
        // Predicated region
        $region17: #{tpu_custom_call.1} parent=11 // pred_check
          %p156 = pneg %p55
        $region18: #{tpu_custom_call.1} parent=11 // pred_check_branch
          %158 = sbr.rel (%p156) target = $region20
        $region19: #{tpu_custom_call.1} parent=11 // pred_region
          %s160 = ssub.s32 256, 256
          %161 = vsyncadd [#allocation8], %s160
          %s162 = sshll.u32 [#allocation7], 4
          %s163 = int_to_ptr.vmem [resolvable:$true] %s162
          %168 = dma.hbm_to_vmem [thread:$0]  %s1, 256, %s163, [#allocation8], 128, 128, 8
        $region20: #{tpu_custom_call.1} parent=11 // pred_fallthru
          _
      $region12: #{tpu_custom_call.1} parent=5 // pred_fallthru
        _
      %p169 = scmp.lt.s32.totalorder %s13, 2
      // Predicated region
      $region21: #{tpu_custom_call.1} parent=5 // pred_check
        %p170 = pneg %p169
      $region22: #{tpu_custom_call.1} parent=5 // pred_check_branch
        %172 = sbr.rel (%p170) target = $region24
      $region23: #{tpu_custom_call.1} parent=5 // pred_region
        // Predicated region
        $region25: #{tpu_custom_call.1} parent=23 // pred_check
          %p173 = pneg %p75
        $region26: #{tpu_custom_call.1} parent=23 // pred_check_branch
          %175 = sbr.rel (%p173) target = $region28
        $region27: #{tpu_custom_call.1} parent=23 // pred_region
          %s176 = sand.u32 %s13, 1
          %s177 = scalar_lea.sflag [#allocation5], %s176
          %s178 = sand.u32 %s65, 1
          %s179 = smul.addr %s178, 128
          %s180 = scalar_lea.vmem [#allocation9], %s179
          %s182 = ssub.s32 2048, 2048
          %183 = vsyncadd %s177, %s182
          %s184 = smul.addr %s13, 16
          %s185 = smul.addr %s184, 128
          %s186 = scalar_lea.hbm %s2, %s185
          %s187 = sshll.u32 %s180, 4
          %s188 = int_to_ptr.vmem [resolvable:$true] %s187
          %193 = dma.hbm_to_vmem [thread:$0]  %s186, 2048, %s188, %s177, 128, 128, 8
        $region28: #{tpu_custom_call.1} parent=23 // pred_fallthru
          _
        // Predicated region
        $region29: #{tpu_custom_call.1} parent=23 // pred_check
          %p194 = pneg %p101
        $region30: #{tpu_custom_call.1} parent=23 // pred_check_branch
          %196 = sbr.rel (%p194) target = $region32
        $region31: #{tpu_custom_call.1} parent=23 // pred_region
          %p197 = scmp.lt.s32.totalorder %s13, 1
          %s198 = scalar_select %p197, %s13, 1
          %s199 = scalar_lea.vmem %s3, %s198
        $region32: #{tpu_custom_call.1} parent=23 // pred_fallthru
          _
      $region24: #{tpu_custom_call.1} parent=5 // pred_fallthru
        _
      %p200 = scmp.le.s32.totalorder 1, %s13
      %p201 = scmp.lt.s32.totalorder %s13, 3
      %p202 = pnand %p200, %p201
      %p203 = pneg %p202
      // Predicated region
      $region33: #{tpu_custom_call.1} parent=5 // pred_check
        _
      $region34: #{tpu_custom_call.1} parent=5 // pred_check_branch
        %205 = sbr.rel (%p202) target = $region36
      $region35: #{tpu_custom_call.1} parent=5 // pred_region
        %s206 = ssub.s32 %s13, 1
        // Predicated region
        $region37: #{tpu_custom_call.1} parent=35 // pred_check
          %p207 = pneg %p34
        $region38: #{tpu_custom_call.1} parent=35 // pred_check_branch
          %209 = sbr.rel (%p207) target = $region40
        $region39: #{tpu_custom_call.1} parent=35 // pred_region
          %210 = dma.done [#allocation5], 256
        $region40: #{tpu_custom_call.1} parent=35 // pred_fallthru
          _
        // Predicated region
        $region41: #{tpu_custom_call.1} parent=35 // pred_check
          %p211 = pneg %p55
        $region42: #{tpu_custom_call.1} parent=35 // pred_check_branch
          %213 = sbr.rel (%p211) target = $region44
        $region43: #{tpu_custom_call.1} parent=35 // pred_region
          %214 = dma.done [#allocation8], 256
        $region44: #{tpu_custom_call.1} parent=35 // pred_fallthru
          _
        %s215 = sand.u32 %s18, 1
        %s216 = scalar_lea.sflag [#allocation5], %s215
        %s217 = sand.u32 %s68, 1
        %s218 = smul.addr %s217, 128
        %s219 = scalar_lea.vmem [#allocation9], %s218
        // Predicated region
        $region45: #{tpu_custom_call.1} parent=35 // pred_check
          %p220 = pneg %p81
        $region46: #{tpu_custom_call.1} parent=35 // pred_check_branch
          %222 = sbr.rel (%p220) target = $region48
        $region47: #{tpu_custom_call.1} parent=35 // pred_region
          %223 = dma.done %s216, 2048
        $region48: #{tpu_custom_call.1} parent=35 // pred_fallthru
          _
        %p224 = pneg %p34
        %p225 = pneg %p31
        %p226 = pneg %p55
        %p227 = pneg %p52
        %s228 = sand.u32 %s18, 1
        %s229 = scalar_lea.sflag [#allocation5], %s228
        %s230 = sand.u32 %s68, 1
        %s231 = smul.addr %s230, 128
        %s232 = scalar_lea.vmem [#allocation9], %s231
        %p233 = pneg %p81
        %p234 = pneg %p78
        %p235 = scmp.lt.s32.totalorder %s18, 1
        %s236 = scalar_select %p235, %s18, 1
        %s237 = scalar_lea.vmem %s3, %s236
        %p238 = pneg %p107
        %p239 = pneg %p104
        %p240 = pneg %p128
        %p241 = pneg %p125
        %p242 = scmp.lt.s32.totalorder %s18, 1
        %s243 = scalar_select %p242, %s18, 1
        %s244 = scalar_lea.vmem %s3, %s243
        %p245 = scmp.eq.s32.totalorder %s18, 0
        // Predicated region
        $region49: #{tpu_custom_call.1} parent=35 // pred_check
          %p246 = pneg %p245
        $region50: #{tpu_custom_call.1} parent=35 // pred_check_branch
          %248 = sbr.rel (%p246) target = $region52
        $region51: #{tpu_custom_call.1} parent=35 // pred_region
          %v249 = vld [vmem:[#allocation4] sm:$0xff]
          %v250 = vld [vmem:[#allocation4 + $0x8] sm:$0xff]
          %vm251 = vcmask 130048
          %v252 = vsel %vm251, %v249, 0.0
          %253 = vadd.xlane.f32.xlu0 %v252
          %v254 = vpop.xlane.xlu0 %253
          %v255 = vsel %vm251, %v250, 0.0
          %256 = vadd.xlane.f32.xlu0 %v255
          %v257 = vpop.xlane.xlu0 %256
          %v258 = vadd.f32 %v252, %v255
          %v259 = vrot.slane %v258, 4
          %v260 = vadd.f32 %v258, %v259
          %v261 = vrot.slane %v260, 2
          %v262 = vadd.f32 %v260, %v261
          %v263 = vrot.slane %v262, 1
          %v264 = vadd.f32 %v262, %v263
          %v265 = vrsqrt.pop %v254
          %v266 = vrsqrt.pop %v257
          %v267 = vmul.f32 %v249, %v265
          %v268 = vmul.f32 %v250, %v266
          %v269 = vrsqrt.pop %v264
          %v270 = vmul.f32 %v267, %v269
          %v271 = vmul.f32 %v268, %v269
          %272 = vst.msk [vmem:[#allocation2] sm:$0xff] %vm251, %v270
          %273 = vst.msk [vmem:[#allocation2 + $0x8] sm:$0xff] %vm251, %v271
          %v274 = vld [vmem:[#allocation7] sm:$0xff]
          %v275 = vld [vmem:[#allocation7 + $0x8] sm:$0xff]
          %276 = vst [vmem:[#allocation3] sm:$0xff] %v274
          %277 = vst [vmem:[#allocation3 + $0x8] sm:$0xff] %v275
        $region52: #{tpu_custom_call.1} parent=35 // pred_fallthru
          _
        %v278 = vld [vmem:[#allocation2] sm:$0xff]
        %v279 = vld [vmem:[#allocation2 + $0x8] sm:$0xff]
        %v280 = vld [vmem:[#allocation3] sm:$0xff]
        %v281 = vld [vmem:[#allocation3 + $0x8] sm:$0xff]
        %282 = vxpose.xlu0.b32.start [1/16] %v278, 128
        %283 = vxpose.xlu0.b32.cont [2/16] %v279, 128
        %284 = vxpose.xlu0.b32.cont [3/16] 0.0, 128
        %285 = vxpose.xlu0.b32.cont [4/16] 0.0, 128
        %286 = vxpose.xlu0.b32.cont [5/16] 0.0, 128
        %287 = vxpose.xlu0.b32.cont [6/16] 0.0, 128
        %288 = vxpose.xlu0.b32.cont [7/16] 0.0, 128
        %289 = vxpose.xlu0.b32.cont [8/16] 0.0, 128
        %290 = vxpose.xlu0.b32.cont [9/16] 0.0, 128
        %291 = vxpose.xlu0.b32.cont [10/16] 0.0, 128
        %292 = vxpose.xlu0.b32.cont [11/16] 0.0, 128
        %293 = vxpose.xlu0.b32.cont [12/16] 0.0, 128
        %294 = vxpose.xlu0.b32.cont [13/16] 0.0, 128
        %295 = vxpose.xlu0.b32.cont [14/16] 0.0, 128
        %296 = vxpose.xlu0.b32.cont [15/16] 0.0, 128
        %297 = vxpose.xlu0.b32.end [16/16] 0.0, 128
        %v298 = vpop.trf.xlu0
        %v299 = vpop.trf.xlu0
        %v300 = vpop.trf.xlu0
        %v301 = vpop.trf.xlu0
        %v302 = vpop.trf.xlu0
        %v303 = vpop.trf.xlu0
        %v304 = vpop.trf.xlu0
        %v305 = vpop.trf.xlu0
        %v306 = vpop.trf.xlu0
        %v307 = vpop.trf.xlu0
        %v308 = vpop.trf.xlu0
        %v309 = vpop.trf.xlu0
        %v310 = vpop.trf.xlu0
        %v311 = vpop.trf.xlu0
        %v312 = vpop.trf.xlu0
        %v313 = vpop.trf.xlu0
        %vm314 = vcmask 130048
        %v316 = vsel %vm314, %v298, 0
        %v319 = vsel %vm314, %v299, 0
        %321 = vmatprep.subr.mxu0 0.0
        %322 = vmatpush1.msra.mxu0 %v280
        %323 = vmatprep.subr.mxu0 0.0
        %324 = vmatpush1.msra.mxu0 %v281
        %325 = vmatprep.subr.mxu0 0.0
        %326 = vmatpush1.msra.mxu0 0.0
        %327 = vmatprep.subr.mxu0 0.0
        %328 = vmatpush1.msra.mxu0 0.0
        %329 = vmatprep.subr.mxu0 0.0
        %330 = vmatpush1.msra.mxu0 0.0
        %331 = vmatprep.subr.mxu0 0.0
        %332 = vmatpush1.msra.mxu0 0.0
        %333 = vmatprep.subr.mxu0 0.0
        %334 = vmatpush1.msra.mxu0 0.0
        %335 = vmatprep.subr.mxu0 0.0
        %336 = vmatpush1.msra.mxu0 0.0
        %337 = vmatprep.subr.mxu0 0.0
        %338 = vmatpush1.msra.mxu0 0.0
        %339 = vmatprep.subr.mxu0 0.0
        %340 = vmatpush1.msra.mxu0 0.0
        %341 = vmatprep.subr.mxu0 0.0
        %342 = vmatpush1.msra.mxu0 0.0
        %343 = vmatprep.subr.mxu0 0.0
        %344 = vmatpush1.msra.mxu0 0.0
        %345 = vmatprep.subr.mxu0 0.0
        %346 = vmatpush1.msra.mxu0 0.0
        %347 = vmatprep.subr.mxu0 0.0
        %348 = vmatpush1.msra.mxu0 0.0
        %349 = vmatprep.subr.mxu0 0.0
        %350 = vmatpush1.msra.mxu0 0.0
        %351 = vmatprep.subr.mxu0 0.0
        %352 = vmatpush1.msra.mxu0 0.0
        %353 = vmatprep.subr.mxu0 0.0
        %354 = vmatpush1.msra.mxu0 0.0
        %355 = vmatprep.subr.mxu0 0.0
        %356 = vmatpush1.msra.mxu0 0.0
        %357 = vmatprep.subr.mxu0 0.0
        %358 = vmatpush1.msra.mxu0 0.0
        %359 = vmatprep.subr.mxu0 0.0
        %360 = vmatpush1.msra.mxu0 0.0
        %361 = vmatprep.subr.mxu0 0.0
        %362 = vmatpush1.msra.mxu0 0.0
        %363 = vmatprep.subr.mxu0 0.0
        %364 = vmatpush1.msra.mxu0 0.0
        %365 = vmatprep.subr.mxu0 0.0
        %366 = vmatpush1.msra.mxu0 0.0
        %367 = vmatprep.subr.mxu0 0.0
        %368 = vmatpush1.msra.mxu0 0.0
        %369 = vmatprep.subr.mxu0 0.0
        %370 = vmatpush1.msra.mxu0 0.0
        %371 = vmatprep.subr.mxu0 0.0
        %372 = vmatpush1.msra.mxu0 0.0
        %373 = vmatprep.subr.mxu0 0.0
        %374 = vmatpush1.msra.mxu0 0.0
        %375 = vmatprep.subr.mxu0 0.0
        %376 = vmatpush1.msra.mxu0 0.0
        %377 = vmatprep.subr.mxu0 0.0
        %378 = vmatpush1.msra.mxu0 0.0
        %379 = vmatprep.subr.mxu0 0.0
        %380 = vmatpush1.msra.mxu0 0.0
        %381 = vmatprep.subr.mxu0 0.0
        %382 = vmatpush1.msra.mxu0 0.0
        %383 = vmatprep.subr.mxu0 0.0
        %384 = vmatpush1.msra.mxu0 0.0
        %385 = vmatprep.mubr.f32.mxu0 0.0
        %386 = vmatmul.mubr.f32.gmra.mrb[0].mxu0 %v316
        %v387 = vpop.f32.mrb[0].mxu0
        %v388 = vadd.f32 0.0, %v387
        %v389 = vpop.f32.mrb[0].mxu0
        %390 = vmatprep.mubr.f32.mxu0 0.0
        %391 = vmatmul.mubr.f32.gmra.mrb[0].mxu0 %v319
        %v392 = vpop.f32.mrb[0].mxu0
        %v393 = vadd.f32 0.0, %v392
        %v394 = vpop.f32.mrb[0].mxu0
        %395 = vdwg.mxu0
        %v396 = vld [vmem:[%s219] sm:$0xff]
        %v397 = vld [vmem:[%s219 + $0x8] sm:$0xff]
        %v398 = vld [vmem:[%s219 + $0x10] sm:$0xff]
        %v399 = vld [vmem:[%s219 + $0x18] sm:$0xff]
        %v400 = vld [vmem:[%s219 + $0x20] sm:$0xff]
        %v401 = vld [vmem:[%s219 + $0x28] sm:$0xff]
        %v402 = vld [vmem:[%s219 + $0x30] sm:$0xff]
        %v403 = vld [vmem:[%s219 + $0x38] sm:$0xff]
        %v404 = vld [vmem:[%s219 + $0x40] sm:$0xff]
        %v405 = vld [vmem:[%s219 + $0x48] sm:$0xff]
        %v406 = vld [vmem:[%s219 + $0x50] sm:$0xff]
        %v407 = vld [vmem:[%s219 + $0x58] sm:$0xff]
        %v408 = vld [vmem:[%s219 + $0x60] sm:$0xff]
        %v409 = vld [vmem:[%s219 + $0x68] sm:$0xff]
        %v410 = vld [vmem:[%s219 + $0x70] sm:$0xff]
        %v411 = vld [vmem:[%s219 + $0x78] sm:$0xff]
        %v412 = vld [vmem:[%s244] sm:$0x1]
        %v414 = vlaneseq
        %v415 = vshrl.u32 %v414, 7
        %v416 = vsub.s32 0, %v415
        %v417 = vrot.slane %v412, %v416
        %419 = vmatprep.subr.mxu0 0.0
        %420 = vmatpush1.msra.mxu0 %v396
        %421 = vmatprep.subr.mxu0 0.0
        %422 = vmatpush1.msra.mxu0 %v397
        %423 = vmatprep.subr.mxu0 0.0
        %424 = vmatpush1.msra.mxu0 %v398
        %425 = vmatprep.subr.mxu0 0.0
        %426 = vmatpush1.msra.mxu0 %v399
        %427 = vmatprep.subr.mxu0 0.0
        %428 = vmatpush1.msra.mxu0 %v400
        %429 = vmatprep.subr.mxu0 0.0
        %430 = vmatpush1.msra.mxu0 %v401
        %431 = vmatprep.subr.mxu0 0.0
        %432 = vmatpush1.msra.mxu0 %v402
        %433 = vmatprep.subr.mxu0 0.0
        %434 = vmatpush1.msra.mxu0 %v403
        %435 = vmatprep.subr.mxu0 0.0
        %436 = vmatpush1.msra.mxu0 %v404
        %437 = vmatprep.subr.mxu0 0.0
        %438 = vmatpush1.msra.mxu0 %v405
        %439 = vmatprep.subr.mxu0 0.0
        %440 = vmatpush1.msra.mxu0 %v406
        %441 = vmatprep.subr.mxu0 0.0
        %442 = vmatpush1.msra.mxu0 %v407
        %443 = vmatprep.subr.mxu0 0.0
        %444 = vmatpush1.msra.mxu0 %v408
        %445 = vmatprep.subr.mxu0 0.0
        %446 = vmatpush1.msra.mxu0 %v409
        %447 = vmatprep.subr.mxu0 0.0
        %448 = vmatpush1.msra.mxu0 %v410
        %449 = vmatprep.subr.mxu0 0.0
        %450 = vmatpush1.msra.mxu0 %v411
        %451 = vmatprep.subr.mxu0 0.0
        %452 = vmatpush1.msra.mxu0 0.0
        %453 = vmatprep.subr.mxu0 0.0
        %454 = vmatpush1.msra.mxu0 0.0
        %455 = vmatprep.subr.mxu0 0.0
        %456 = vmatpush1.msra.mxu0 0.0
        %457 = vmatprep.subr.mxu0 0.0
        %458 = vmatpush1.msra.mxu0 0.0
        %459 = vmatprep.subr.mxu0 0.0
        %460 = vmatpush1.msra.mxu0 0.0
        %461 = vmatprep.subr.mxu0 0.0
        %462 = vmatpush1.msra.mxu0 0.0
        %463 = vmatprep.subr.mxu0 0.0
        %464 = vmatpush1.msra.mxu0 0.0
        %465 = vmatprep.subr.mxu0 0.0
        %466 = vmatpush1.msra.mxu0 0.0
        %467 = vmatprep.subr.mxu0 0.0
        %468 = vmatpush1.msra.mxu0 0.0
        %469 = vmatprep.subr.mxu0 0.0
        %470 = vmatpush1.msra.mxu0 0.0
        %471 = vmatprep.subr.mxu0 0.0
        %472 = vmatpush1.msra.mxu0 0.0
        %473 = vmatprep.subr.mxu0 0.0
        %474 = vmatpush1.msra.mxu0 0.0
        %475 = vmatprep.subr.mxu0 0.0
        %476 = vmatpush1.msra.mxu0 0.0
        %477 = vmatprep.subr.mxu0 0.0
        %478 = vmatpush1.msra.mxu0 0.0
        %479 = vmatprep.subr.mxu0 0.0
        %480 = vmatpush1.msra.mxu0 0.0
        %481 = vmatprep.subr.mxu0 0.0
        %482 = vmatpush1.msra.mxu0 0.0
        %483 = vmatprep.mubr.f32.mxu0 0.0
        %484 = vmatmul.mubr.f32.gmra.mrb[0].mxu0 %v388
        %v485 = vpop.f32.mrb[0].mxu0
        %v486 = vadd.f32 %v417, %v485
        %v487 = vpop.f32.mrb[0].mxu0
        %488 = vmatprep.mubr.f32.mxu0 0.0
        %489 = vmatmul.mubr.f32.gmra.mrb[0].mxu0 %v393
        %v490 = vpop.f32.mrb[0].mxu0
        %v491 = vadd.f32 %v417, %v490
        %v492 = vpop.f32.mrb[0].mxu0
        %493 = vdwg.mxu0
        %494 = vst [vmem:[#allocation3] sm:$0xff] %v486
        %495 = vst [vmem:[#allocation3 + $0x8] sm:$0xff] %v491
        %p496 = scmp.eq.s32.totalorder %s18, 1
        // Predicated region
        $region53: #{tpu_custom_call.1} parent=35 // pred_check
          %p497 = pneg %p496
        $region54: #{tpu_custom_call.1} parent=35 // pred_check_branch
          %499 = sbr.rel (%p497) target = $region56
        $region55: #{tpu_custom_call.1} parent=35 // pred_region
          %500 = vst [vmem:[#allocation10] sm:$0xff] %v486
          %501 = vst [vmem:[#allocation10 + $0x8] sm:$0xff] %v491
        $region56: #{tpu_custom_call.1} parent=35 // pred_fallthru
          _
        // Predicated region
        $region57: #{tpu_custom_call.1} parent=35 // pred_check
          %p502 = pneg %p125
        $region58: #{tpu_custom_call.1} parent=35 // pred_check_branch
          %504 = sbr.rel (%p502) target = $region60
        $region59: #{tpu_custom_call.1} parent=35 // pred_region
          %s506 = ssub.s32 256, 256
          %507 = vsyncadd [#allocation6], %s506
          %s508 = sshll.u32 [#allocation10], 4
          %s509 = int_to_ptr.vmem [resolvable:$true] %s508
          %514 = dma.vmem_to_hbm [thread:$0]  %s509, 256, %s4, [#allocation6], 128, 128, 8
        $region60: #{tpu_custom_call.1} parent=35 // pred_fallthru
          _
        // Predicated region
        $region61: #{tpu_custom_call.1} parent=35 // pred_check
          %p515 = pneg %p125
        $region62: #{tpu_custom_call.1} parent=35 // pred_check_branch
          %517 = sbr.rel (%p515) target = $region64
        $region63: #{tpu_custom_call.1} parent=35 // pred_region
          %518 = dma.done [#allocation6], 256
        $region64: #{tpu_custom_call.1} parent=35 // pred_fallthru
          _
      $region36: #{tpu_custom_call.1} parent=5 // pred_fallthru
        _
      %p519 = scmp.le.s32.totalorder 2, %s13
      // Predicated region
      $region65: #{tpu_custom_call.1} parent=5 // pred_check
        %p520 = pneg %p519
      $region66: #{tpu_custom_call.1} parent=5 // pred_check_branch
        %522 = sbr.rel (%p520) target = $region68
      $region67: #{tpu_custom_call.1} parent=5 // pred_region
        %s523 = ssub.s32 %s13, 2
      $region68: #{tpu_custom_call.1} parent=5 // pred_fallthru
        _
    $region6: #{tpu_custom_call.1} parent=1 // loop_footer
      %s17 = sadd.s32 1, %s13
    $region7: #{tpu_custom_call.1} parent=1 // loop_footer_branch
      %12 = sbr.rel target = $region3
    $region8: #{tpu_custom_call.1} parent=1 // loop_exit
      _
    %524 = vsyncpa [#allocation5], 1
    %s525 = scalar_lea.sflag [#allocation5], 1
    %526 = vsyncpa %s525, 1
    %527 = vsyncpa [#allocation8], 1
    %528 = vsyncpa [#allocation6], 1
    %s529 = scalar_lea.sflag [#allocation6], 1
    %530 = vsyncpa %s529, 1

</llo_original>
